<compile_context>
chip_gen: v7x
topology: tpu7x:2x2x1
jax: 0.10.0
libtpu: 0.0.40
codegen_flags: <defaults>
</compile_context>

<pallas_src>
import jax
import jax.numpy as jnp
from jax.experimental import pallas as pl
from jax.experimental.pallas import tpu as pltpu

# ---- module hyperparameters (deterministic, in-script) ----
IN_DIM = 32
OUT_DIM = 64
RANK = 8
ALPHA = 16.0
DROPOUT = 0.0          # p=0.0 -> dropout is identity in both train/eval
SCALE = ALPHA / RANK   # 2.0
BATCH = 2
SEQ = 8

_LANE = 128
_SUBLANE = 8
_RANK_PAD = _LANE      # rank dimension zero-padded to a full lane width


def _round_up(x, m):
    return ((x + m - 1) // m) * m


def _pick_tile(padded, max_tile, unit):
    """Largest multiple of `unit` <= max_tile that divides `padded`."""
    t = min(padded, max_tile)
    t -= t % unit
    t = max(t, unit)
    while padded % t != 0:
        t -= unit
    return t


def lora_linear_kernel(x_ref, w_ref, b_ref, a_ref, bw_ref, o_ref,
                       acc_ref, xa_ref):
    """One (i, j, k) grid step.

    x_ref : (tm, tk)            activations tile
    w_ref : (tk, tn)            frozen weight tile (pre-transposed)
    b_ref : (1, tn)  f32        frozen bias tile
    a_ref : (tk, 128)           LoRA A tile (pre-transposed, rank zero-padded)
    bw_ref: (128, tn)           LoRA B tile (pre-transposed, pre-scaled, padded)
    o_ref : (tm, tn)            output tile
    acc_ref: (tm, tn)  f32      frozen-path accumulator (bias folded in)
    xa_ref : (tm, 128) f32      x @ A accumulator, persists across the j loop
    """
    j = pl.program_id(1)
    k = pl.program_id(2)

    @pl.when(k == 0)
    def _init_acc():
        # Fold the bias into the accumulator init instead of an epilogue add.
        acc_ref[...] = jnp.broadcast_to(
            b_ref[...].astype(jnp.float32), acc_ref.shape)

    @pl.when(jnp.logical_and(j == 0, k == 0))
    def _init_xa():
        xa_ref[...] = jnp.zeros_like(xa_ref)

    x = x_ref[...]
    # Frozen path: accumulate x @ W over the K grid axis (f32 accumulation).
    acc_ref[...] += jnp.dot(x, w_ref[...], preferred_element_type=jnp.float32)

    # LoRA down-projection: computed once per row block (j == 0 sweep only);
    # xa_ref persists across the j loop so j > 0 reuses it for free.
    # TODO(synk): dropout p=0.0 is identity; nonzero dropout would apply a
    # pltpu stateful-PRNG mask to `x` here before this matmul.
    @pl.when(j == 0)
    def _lora_down():
        xa_ref[...] += jnp.dot(x, a_ref[...],
                               preferred_element_type=jnp.float32)

    @pl.when(k == pl.num_programs(2) - 1)
    def _finalize():
        # alpha/rank is folded into bw outside the kernel.  Keep the epilogue
        # matmul in the MXU operand dtype (no f32 upcast of B on the bf16 path).
        lora = jnp.dot(xa_ref[...].astype(bw_ref.dtype), bw_ref[...],
                       preferred_element_type=jnp.float32)
        o_ref[...] = (acc_ref[...] + lora).astype(o_ref.dtype)


def prepare_lora_params(w, b, a, bw, *, compute_dtype=jnp.bfloat16):
    """One-time prep of the frozen/LoRA parameters (they never change).

    w : (in_dim, out_dim)  frozen weight, pre-transposed (W^T)
    b : (out_dim,)         frozen bias
    a : (in_dim, rank)     LoRA A, pre-transposed (A^T)
    bw: (rank, out_dim)    LoRA B, pre-transposed (B^T)

    Pads in/out dims to lane multiples, pads rank to 128 lanes, folds the
    alpha/rank scale into B, and casts MXU operands to compute_dtype once --
    so per-call work is only the activation pad/cast.
    """
    in_dim, out_dim = w.shape
    rank = a.shape[1]
    k_pad = _round_up(in_dim, _LANE)
    n_pad = _round_up(out_dim, _LANE)

    w_p = jnp.pad(w, ((0, k_pad - in_dim),
                      (0, n_pad - out_dim))).astype(compute_dtype)
    a_p = jnp.pad(a, ((0, k_pad - in_dim),
                      (0, _RANK_PAD - rank))).astype(compute_dtype)
    bw_p = jnp.pad(SCALE * bw, ((0, _RANK_PAD - rank),
                                (0, n_pad - out_dim))).astype(compute_dtype)
    b_p = jnp.pad(b, (0, n_pad - out_dim)).reshape(1, n_pad).astype(jnp.float32)

    return dict(w=w_p, b=b_p, a=a_p, bw=bw_p,
                in_dim=in_dim, out_dim=out_dim, compute_dtype=compute_dtype)


def lora_linear(x, params, *, tm_max=512, tn_max=512, tk_max=1024,
                vmem_limit_bytes=48 * 1024 * 1024):
    """LoRA linear forward.  x: (batch, seq, in_dim), features last."""
    batch, seq, in_dim = x.shape
    assert in_dim == params["in_dim"]
    out_dim = params["out_dim"]
    compute_dtype = params["compute_dtype"]
    out_dtype = x.dtype

    w_p, b_p, a_p, bw_p = params["w"], params["b"], params["a"], params["bw"]
    k_pad, n_pad = w_p.shape

    m = batch * seq
    m_pad = _round_up(m, _SUBLANE)

    tm = _pick_tile(m_pad, tm_max, _SUBLANE)
    tn = _pick_tile(n_pad, tn_max, _LANE)
    tk = _pick_tile(k_pad, tk_max, _LANE)
    nm, nn, nk = m_pad // tm, n_pad // tn, k_pad // tk

    x2d = jnp.pad(x.reshape(m, in_dim),
                  ((0, m_pad - m), (0, k_pad - in_dim))).astype(compute_dtype)

    op_bytes = jnp.dtype(compute_dtype).itemsize
    cost = pl.CostEstimate(
        flops=(2 * m_pad * k_pad * n_pad            # frozen x @ W
               + 2 * m_pad * k_pad * _RANK_PAD      # x @ A (once per row block)
               + 2 * m_pad * _RANK_PAD * n_pad),    # xa @ B epilogue
        transcendentals=0,
        bytes_accessed=(nn * m_pad * k_pad * op_bytes      # x streamed per j
                        + nm * k_pad * n_pad * op_bytes    # W streamed per i
                        + nm * k_pad * _RANK_PAD * op_bytes        # A (j==0)
                        + nm * nn * _RANK_PAD * tn * op_bytes      # B per (i,j)
                        + nm * n_pad * 4                            # bias
                        + m_pad * n_pad * jnp.dtype(out_dtype).itemsize),
    )

    # A is only consumed on the j == 0 sweep; pin its block index for j > 0 so
    # its DMA is not re-issued for every output-column block.
    def a_index_map(i, j, k):
        return (jnp.where(j == 0, k, 0), 0)

    out = pl.pallas_call(
        lora_linear_kernel,
        out_shape=jax.ShapeDtypeStruct((m_pad, n_pad), out_dtype),
        grid_spec=pltpu.PrefetchScalarGridSpec(
            num_scalar_prefetch=0,
            grid=(nm, nn, nk),
            in_specs=[
                pl.BlockSpec((tm, tk), lambda i, j, k: (i, k)),         # x
                # TODO(synk): on v6e, if the W-tile DMA is still exposed in the
                # trace, add pipeline_mode=pl.Buffered(3) here.
                pl.BlockSpec((tk, tn), lambda i, j, k: (k, j)),         # W^T
                pl.BlockSpec((1, tn), lambda i, j, k: (0, j)),          # bias
                pl.BlockSpec((tk, _RANK_PAD), a_index_map),             # A^T
                pl.BlockSpec((_RANK_PAD, tn), lambda i, j, k: (0, j)),  # s*B^T
            ],
            out_specs=pl.BlockSpec((tm, tn), lambda i, j, k: (i, j)),
            scratch_shapes=[
                pltpu.VMEM((tm, tn), jnp.float32),        # frozen accumulator
                pltpu.VMEM((tm, _RANK_PAD), jnp.float32), # x @ A accumulator
            ],
        ),
        compiler_params=pltpu.CompilerParams(
            # j must be "arbitrary": the x@A dedup relies on the xa scratch
            # carrying across the whole j loop on one core.  i stays "parallel"
            # so row blocks shard across v7x's two TensorCores.
            dimension_semantics=("parallel", "arbitrary", "arbitrary"),
            vmem_limit_bytes=vmem_limit_bytes),
        cost_estimate=cost,
    )(x2d, w_p, b_p, a_p, bw_p)

    return out[:m, :out_dim].reshape(batch, seq, out_dim)


def init_params(key, *, lora_b_zero=False):
    """Deterministic init mirroring the PyTorch module's parameter shapes."""
    k_w, k_b, k_a, k_bw = jax.random.split(key, 4)
    # nn.Linear default init: U(-1/sqrt(in_dim), 1/sqrt(in_dim))
    lim = 1.0 / (IN_DIM ** 0.5)
    w = jax.random.uniform(k_w, (IN_DIM, OUT_DIM), jnp.float32, -lim, lim)  # W^T
    b = jax.random.uniform(k_b, (OUT_DIM,), jnp.float32, -lim, lim)
    # lora_a: kaiming_uniform_(a=sqrt(5)) over (rank,in_dim) -> bound 1/sqrt(in_dim)
    a = jax.random.uniform(k_a, (IN_DIM, RANK), jnp.float32, -lim, lim)     # A^T
    if lora_b_zero:
        bw = jnp.zeros((RANK, OUT_DIM), jnp.float32)        # module's actual init
    else:
        # Nonzero B so the (x@A)@B branch and the alpha/rank fold are actually
        # exercised by the correctness check (zeros would mask bugs there).
        bw = jax.random.uniform(k_bw, (RANK, OUT_DIM), jnp.float32, -0.5, 0.5)
    return w, b, a, bw


if __name__ == "__main__":
    key = jax.random.PRNGKey(0)
    k_x, k_p = jax.random.split(key)
    x = jax.random.normal(k_x, (BATCH, SEQ, IN_DIM), jnp.float32)
    w, b, a, bw = init_params(k_p)

    # Pure-JAX reference of the PyTorch forward.
    ref = x @ w + b + SCALE * ((x @ a) @ bw)

    # Default path: bf16 MXU operands, f32 accumulation (v5e/v6e/v7x fast path).
    params_bf16 = prepare_lora_params(w, b, a, bw, compute_dtype=jnp.bfloat16)
    y = jax.block_until_ready(lora_linear(x, params_bf16))
    assert y.shape == (BATCH, SEQ, OUT_DIM)
    assert jnp.allclose(y, ref, atol=5e-2, rtol=5e-2)

    # f32-operand path: tight-tolerance correctness check of the same kernel.
    params_f32 = prepare_lora_params(w, b, a, bw, compute_dtype=jnp.float32)
    y32 = jax.block_until_ready(lora_linear(x, params_f32))
    assert y32.shape == (BATCH, SEQ, OUT_DIM)
    assert jnp.allclose(y32, ref, atol=1e-5, rtol=1e-5)

    print("KERNEL_OK")
</pallas_src>

<mosaic_0001>
module attributes {stable_mosaic.version = 11 : i64} {
  func.func @lora_linear_kernel(%arg0: i32, %arg1: i32, %arg2: i32, %arg3: memref<16x128xbf16, #tpu.memory_space<vmem>>, %arg4: memref<128x128xbf16, #tpu.memory_space<vmem>>, %arg5: memref<1x128xf32, #tpu.memory_space<vmem>>, %arg6: memref<128x128xbf16, #tpu.memory_space<vmem>>, %arg7: memref<128x128xbf16, #tpu.memory_space<vmem>>, %arg8: memref<16x128xf32, #tpu.memory_space<vmem>>, %arg9: memref<16x128xf32, #tpu.memory_space<vmem>>, %arg10: memref<16x128xf32, #tpu.memory_space<vmem>>) attributes {dimension_semantics = [#tpu.dimension_semantics<parallel>, #tpu.dimension_semantics<arbitrary>, #tpu.dimension_semantics<arbitrary>], iteration_bounds = array<i64: 1, 1, 1>, scalar_prefetch = 0 : i64, scratch_operands = 2 : i64, tpu.core_type = #tpu.core_type<tc>, window_params = [{transform_indices = @transform_0, window_bounds = array<i64: 16, 128>}, {transform_indices = @transform_1, window_bounds = array<i64: 128, 128>}, {transform_indices = @transform_2, window_bounds = array<i64: 1, 128>}, {transform_indices = @transform_3, window_bounds = array<i64: 128, 128>}, {transform_indices = @transform_4, window_bounds = array<i64: 128, 128>}, {transform_indices = @transform_5, window_bounds = array<i64: 16, 128>}]} {
    %c0_i32 = arith.constant 0 : i32
    %0 = arith.cmpi eq, %arg2, %c0_i32 : i32
    %1 = arith.extui %0 : i1 to i32
    %c0_i32_0 = arith.constant 0 : i32
    %2 = arith.cmpi ne, %1, %c0_i32_0 : i32
    scf.if %2 {
      %c0_15 = arith.constant 0 : index
      %c0_16 = arith.constant 0 : index
      %20 = vector.load %arg5[%c0_15, %c0_16] : memref<1x128xf32, #tpu.memory_space<vmem>>, vector<1x128xf32>
      %21 = vector.shape_cast %20 : vector<1x128xf32> to vector<1x128xf32>
      %22 = vector.broadcast %21 : vector<1x128xf32> to vector<16x128xf32>
      %c0_17 = arith.constant 0 : index
      %c0_18 = arith.constant 0 : index
      %23 = vector.load %arg9[%c0_17, %c0_18] : memref<16x128xf32, #tpu.memory_space<vmem>>, vector<16x128xf32>
      tpu.vector_store %arg9[%c0_17, %c0_18], %22 {strides = array<i32>} : memref<16x128xf32, #tpu.memory_space<vmem>>, vector<16x128xf32>,
    } else {
    }
    %c0_i32_1 = arith.constant 0 : i32
    %3 = arith.cmpi eq, %arg1, %c0_i32_1 : i32
    %c0_i32_2 = arith.constant 0 : i32
    %4 = arith.cmpi eq, %arg2, %c0_i32_2 : i32
    %5 = arith.andi %3, %4 : i1
    %6 = arith.extui %5 : i1 to i32
    %c0_i32_3 = arith.constant 0 : i32
    %7 = arith.cmpi ne, %6, %c0_i32_3 : i32
    scf.if %7 {
      %cst_15 = arith.constant 0.000000e+00 : f32
      %20 = vector.broadcast %cst_15 : f32 to vector<16x128xf32>
      %c0_16 = arith.constant 0 : index
      %c0_17 = arith.constant 0 : index
      %21 = vector.load %arg10[%c0_16, %c0_17] : memref<16x128xf32, #tpu.memory_space<vmem>>, vector<16x128xf32>
      tpu.vector_store %arg10[%c0_16, %c0_17], %20 {strides = array<i32>} : memref<16x128xf32, #tpu.memory_space<vmem>>, vector<16x128xf32>,
    } else {
    }
    %c0 = arith.constant 0 : index
    %c0_4 = arith.constant 0 : index
    %8 = vector.load %arg3[%c0, %c0_4] : memref<16x128xbf16, #tpu.memory_space<vmem>>, vector<16x128xbf16>
    %c0_5 = arith.constant 0 : index
    %c0_6 = arith.constant 0 : index
    %9 = vector.load %arg9[%c0_5, %c0_6] : memref<16x128xf32, #tpu.memory_space<vmem>>, vector<16x128xf32>
    %c0_7 = arith.constant 0 : index
    %c0_8 = arith.constant 0 : index
    %10 = vector.load %arg4[%c0_7, %c0_8] : memref<128x128xbf16, #tpu.memory_space<vmem>>, vector<128x128xbf16>
    %cst = arith.constant dense<0.000000e+00> : vector<16x128xf32>
    %11 = tpu.matmul %8, %10, %cst {dimension_numbers = #tpu.dot_dimension_numbers<[1], [0], [0], [1], [0, 0, 1, 1], [], []>} : vector<16x128xbf16>, vector<128x128xbf16>, vector<16x128xf32> -> vector<16x128xf32>
    %12 = arith.addf %9, %11 : vector<16x128xf32>
    %c0_9 = arith.constant 0 : index
    %c0_10 = arith.constant 0 : index
    %13 = vector.load %arg9[%c0_9, %c0_10] : memref<16x128xf32, #tpu.memory_space<vmem>>, vector<16x128xf32>
    tpu.vector_store %arg9[%c0_9, %c0_10], %12 {strides = array<i32>} : memref<16x128xf32, #tpu.memory_space<vmem>>, vector<16x128xf32>,
    %c0_i32_11 = arith.constant 0 : i32
    %14 = arith.cmpi eq, %arg1, %c0_i32_11 : i32
    %15 = arith.extui %14 : i1 to i32
    %c0_i32_12 = arith.constant 0 : i32
    %16 = arith.cmpi ne, %15, %c0_i32_12 : i32
    scf.if %16 {
      %c0_15 = arith.constant 0 : index
      %c0_16 = arith.constant 0 : index
      %20 = vector.load %arg10[%c0_15, %c0_16] : memref<16x128xf32, #tpu.memory_space<vmem>>, vector<16x128xf32>
      %c0_17 = arith.constant 0 : index
      %c0_18 = arith.constant 0 : index
      %21 = vector.load %arg6[%c0_17, %c0_18] : memref<128x128xbf16, #tpu.memory_space<vmem>>, vector<128x128xbf16>
      %cst_19 = arith.constant dense<0.000000e+00> : vector<16x128xf32>
      %22 = tpu.matmul %8, %21, %cst_19 {dimension_numbers = #tpu.dot_dimension_numbers<[1], [0], [0], [1], [0, 0, 1, 1], [], []>} : vector<16x128xbf16>, vector<128x128xbf16>, vector<16x128xf32> -> vector<16x128xf32>
      %23 = arith.addf %20, %22 : vector<16x128xf32>
      %c0_20 = arith.constant 0 : index
      %c0_21 = arith.constant 0 : index
      %24 = vector.load %arg10[%c0_20, %c0_21] : memref<16x128xf32, #tpu.memory_space<vmem>>, vector<16x128xf32>
      tpu.vector_store %arg10[%c0_20, %c0_21], %23 {strides = array<i32>} : memref<16x128xf32, #tpu.memory_space<vmem>>, vector<16x128xf32>,
    } else {
    }
    %c0_i32_13 = arith.constant 0 : i32
    %17 = arith.cmpi eq, %arg2, %c0_i32_13 : i32
    %18 = arith.extui %17 : i1 to i32
    %c0_i32_14 = arith.constant 0 : i32
    %19 = arith.cmpi ne, %18, %c0_i32_14 : i32
    scf.if %19 {
      %c0_15 = arith.constant 0 : index
      %c0_16 = arith.constant 0 : index
      %20 = vector.load %arg10[%c0_15, %c0_16] : memref<16x128xf32, #tpu.memory_space<vmem>>, vector<16x128xf32>
      %21 = arith.truncf %20 : vector<16x128xf32> to vector<16x128xbf16>
      %c0_17 = arith.constant 0 : index
      %c0_18 = arith.constant 0 : index
      %22 = vector.load %arg7[%c0_17, %c0_18] : memref<128x128xbf16, #tpu.memory_space<vmem>>, vector<128x128xbf16>
      %cst_19 = arith.constant dense<0.000000e+00> : vector<16x128xf32>
      %23 = tpu.matmul %21, %22, %cst_19 {dimension_numbers = #tpu.dot_dimension_numbers<[1], [0], [0], [1], [0, 0, 1, 1], [], []>} : vector<16x128xbf16>, vector<128x128xbf16>, vector<16x128xf32> -> vector<16x128xf32>
      %c0_20 = arith.constant 0 : index
      %c0_21 = arith.constant 0 : index
      %24 = vector.load %arg9[%c0_20, %c0_21] : memref<16x128xf32, #tpu.memory_space<vmem>>, vector<16x128xf32>
      %25 = arith.addf %24, %23 : vector<16x128xf32>
      %c0_22 = arith.constant 0 : index
      %c0_23 = arith.constant 0 : index
      %26 = vector.load %arg8[%c0_22, %c0_23] : memref<16x128xf32, #tpu.memory_space<vmem>>, vector<16x128xf32>
      tpu.vector_store %arg8[%c0_22, %c0_23], %25 {strides = array<i32>} : memref<16x128xf32, #tpu.memory_space<vmem>>, vector<16x128xf32>,
    } else {
    }
    return
  }
  func.func @transform_0(%arg0: i32, %arg1: i32, %arg2: i32) -> (i32, i32) {
    %c0_i32 = arith.constant 0 : i32
    return %arg0, %arg2 : i32, i32
  }
  func.func @transform_1(%arg0: i32, %arg1: i32, %arg2: i32) -> (i32, i32) {
    %c0_i32 = arith.constant 0 : i32
    return %arg2, %arg1 : i32, i32
  }
  func.func @transform_2(%arg0: i32, %arg1: i32, %arg2: i32) -> (i32, i32) {
    %c0_i32 = arith.constant 0 : i32
    %c0_i32_0 = arith.constant 0 : i32
    return %c0_i32, %arg1 : i32, i32
  }
  func.func @transform_3(%arg0: i32, %arg1: i32, %arg2: i32) -> (i32, i32) {
    %c0_i32 = arith.constant 0 : i32
    %0 = arith.cmpi eq, %arg1, %c0_i32 : i32
    %c0_i32_0 = arith.constant 0 : i32
    %1 = arith.select %0, %arg2, %c0_i32_0 : i32
    %c0_i32_1 = arith.constant 0 : i32
    %c0_i32_2 = arith.constant 0 : i32
    return %1, %c0_i32_1 : i32, i32
  }
  func.func @transform_4(%arg0: i32, %arg1: i32, %arg2: i32) -> (i32, i32) {
    %c0_i32 = arith.constant 0 : i32
    %c0_i32_0 = arith.constant 0 : i32
    return %c0_i32, %arg1 : i32, i32
  }
  func.func @transform_5(%arg0: i32, %arg1: i32, %arg2: i32) -> (i32, i32) {
    %c0_i32 = arith.constant 0 : i32
    return %arg0, %arg1 : i32, i32
  }
}

</mosaic_0001>

<llo_original>
// kernel: tpu_custom_call.1
$region0: #{tpu_custom_call.1}
  #allocation0 [shape = 'u32[]', space=smem, size = 0x4, offset = 0x4, fixed_abs, tag = 'smem constant byte address 0x4 - core index']
  #allocation1 [shape = 'u32[144,128]{1,0:T(1,128)}', space=vmem, size = 0x12000, scoped, tag = 'internal scratch']
  #allocation2 [shape = 'f32[16,128]{1,0:T(8,128)}', space=vmem, size = 0x2000, scoped, tag = 'scratch operand']
  #allocation3 [shape = 'f32[16,128]{1,0:T(8,128)}', space=vmem, size = 0x2000, scoped, tag = 'scratch operand']
  %s0 = inlined_call_operand.hbm [shape: bf16[16,128], index: 0, kind: input, shape index: {}]
  %s1 = inlined_call_operand.hbm [shape: bf16[128,128], index: 1, kind: input, shape index: {}]
  %s2 = inlined_call_operand.vmem [shape: f32[1,128], index: 2, kind: input, shape index: {}]
  %s3 = inlined_call_operand.hbm [shape: bf16[128,128], index: 3, kind: input, shape index: {}]
  %s4 = inlined_call_operand.hbm [shape: bf16[128,128], index: 4, kind: input, shape index: {}]
  %s5 = inlined_call_operand.hbm [shape: f32[16,128], index: 5, kind: output, shape index: {}]
  %s6 = sld [smem:[#allocation0]]
  $region62: #{tpu_custom_call.1} parent=0
    _
  %s8 = ssub.s32 1, %s6
  %s9 = scalar_select 0, %s8, %s6
  $region1: #{tpu_custom_call.1} parent=0
    #allocation4 [shape = 'u8[4096]{0}', space=vmem, size = 0x1000, scoped, tag = 'input window, operand 0, single buffered']
    #allocation5 [shape = 's32[1]{0}', space=sflag, size = 0x4, scoped, tag = 'scoped memory for tpu_custom_call.1']
    #allocation6 [shape = 's32[1]{0}', space=sflag, size = 0x4, scoped, tag = 'scoped memory for tpu_custom_call.1']
    #allocation7 [shape = 'u8[32768]{0}', space=vmem, size = 0x8000, scoped, tag = 'input window, operand 1, single buffered']
    #allocation8 [shape = 's32[1]{0}', space=sflag, size = 0x4, scoped, tag = 'scoped memory for tpu_custom_call.1']
    #allocation9 [shape = 'u8[32768]{0}', space=vmem, size = 0x8000, scoped, tag = 'input window, operand 3, single buffered']
    #allocation10 [shape = 'u8[32768]{0}', space=vmem, size = 0x8000, scoped, tag = 'input window, operand 4, single buffered']
    #allocation11 [shape = 's32[1]{0}', space=sflag, size = 0x4, scoped, tag = 'scoped memory for tpu_custom_call.1']
    #allocation12 [shape = 'u8[8192]{0}', space=vmem, size = 0x2000, scoped, tag = 'output window, operand 0, single buffered']
    %10 = vsyncpa [#allocation5], 0
    %11 = vsyncpa [#allocation8], 0
    %12 = vsyncpa [#allocation11], 0
    %13 = vsyncpa [#allocation6], 0
    // Predicated region
    $region2: #{tpu_custom_call.1} parent=1 // pred_check
      _
    $region3: #{tpu_custom_call.1} parent=1 // pred_check_branch
      %15 = sbr.rel (0) target = $region5
    $region4: #{tpu_custom_call.1} parent=1 // pred_region
      %s17 = ssub.s32 128, 128
      %18 = vsyncadd [#allocation5], %s17
      %s19 = sshll.u32 [#allocation4], 4
      %s20 = int_to_ptr.vmem [resolvable:$true] %s19
      %25 = dma.hbm_to_vmem [thread:$0]  %s0, 128, %s20, [#allocation5], 64, 64, 4
    $region5: #{tpu_custom_call.1} parent=1 // pred_fallthru
      _
    // Predicated region
    $region6: #{tpu_custom_call.1} parent=1 // pred_check
      _
    $region7: #{tpu_custom_call.1} parent=1 // pred_check_branch
      %27 = sbr.rel (0) target = $region9
    $region8: #{tpu_custom_call.1} parent=1 // pred_region
      %s29 = ssub.s32 1024, 1024
      %30 = vsyncadd [#allocation8], %s29
      %s31 = sshll.u32 [#allocation7], 4
      %s32 = int_to_ptr.vmem [resolvable:$true] %s31
      %37 = dma.hbm_to_vmem [thread:$0]  %s1, 1024, %s32, [#allocation8], 64, 64, 4
    $region9: #{tpu_custom_call.1} parent=1 // pred_fallthru
      _
    // Predicated region
    $region10: #{tpu_custom_call.1} parent=1 // pred_check
      _
    $region11: #{tpu_custom_call.1} parent=1 // pred_check_branch
      %39 = sbr.rel (0) target = $region13
    $region12: #{tpu_custom_call.1} parent=1 // pred_region
      _
    $region13: #{tpu_custom_call.1} parent=1 // pred_fallthru
      _
    // Predicated region
    $region14: #{tpu_custom_call.1} parent=1 // pred_check
      _
    $region15: #{tpu_custom_call.1} parent=1 // pred_check_branch
      %41 = sbr.rel (0) target = $region17
    $region16: #{tpu_custom_call.1} parent=1 // pred_region
      %p42 = scmp.eq.s32.totalorder 0, 0
      %s43 = scalar_select %p42, 0, 0
      %s44 = smul.u32 16, %s43
      %s46 = ssub.s32 1024, 1024
      %47 = vsyncadd [#allocation8], %s46
      %s48 = smul.addr %s44, 64
      %s49 = scalar_lea.hbm %s3, %s48
      %s50 = sshll.u32 [#allocation9], 4
      %s51 = int_to_ptr.vmem [resolvable:$true] %s50
      %56 = dma.hbm_to_vmem [thread:$0]  %s49, 1024, %s51, [#allocation8], 64, 64, 4
    $region17: #{tpu_custom_call.1} parent=1 // pred_fallthru
      _
    // Predicated region
    $region18: #{tpu_custom_call.1} parent=1 // pred_check
      _
    $region19: #{tpu_custom_call.1} parent=1 // pred_check_branch
      %58 = sbr.rel (0) target = $region21
    $region20: #{tpu_custom_call.1} parent=1 // pred_region
      %s60 = ssub.s32 1024, 1024
      %61 = vsyncadd [#allocation11], %s60
      %s62 = sshll.u32 [#allocation10], 4
      %s63 = int_to_ptr.vmem [resolvable:$true] %s62
      %68 = dma.hbm_to_vmem [thread:$0]  %s4, 1024, %s63, [#allocation11], 64, 64, 4
    $region21: #{tpu_custom_call.1} parent=1 // pred_fallthru
      _
    // Predicated region
    $region22: #{tpu_custom_call.1} parent=1 // pred_check
      _
    $region23: #{tpu_custom_call.1} parent=1 // pred_check_branch
      %70 = sbr.rel (0) target = $region25
    $region24: #{tpu_custom_call.1} parent=1 // pred_region
      %71 = dma.done [#allocation5], 128
    $region25: #{tpu_custom_call.1} parent=1 // pred_fallthru
      _
    // Predicated region
    $region26: #{tpu_custom_call.1} parent=1 // pred_check
      _
    $region27: #{tpu_custom_call.1} parent=1 // pred_check_branch
      %73 = sbr.rel (0) target = $region29
    $region28: #{tpu_custom_call.1} parent=1 // pred_region
      %74 = dma.done [#allocation8], 1024
    $region29: #{tpu_custom_call.1} parent=1 // pred_fallthru
      _
    // Predicated region
    $region30: #{tpu_custom_call.1} parent=1 // pred_check
      _
    $region31: #{tpu_custom_call.1} parent=1 // pred_check_branch
      %76 = sbr.rel (0) target = $region33
    $region32: #{tpu_custom_call.1} parent=1 // pred_region
      %77 = dma.done [#allocation8], 1024
    $region33: #{tpu_custom_call.1} parent=1 // pred_fallthru
      _
    // Predicated region
    $region34: #{tpu_custom_call.1} parent=1 // pred_check
      _
    $region35: #{tpu_custom_call.1} parent=1 // pred_check_branch
      %79 = sbr.rel (0) target = $region37
    $region36: #{tpu_custom_call.1} parent=1 // pred_region
      %80 = dma.done [#allocation11], 1024
    $region37: #{tpu_custom_call.1} parent=1 // pred_fallthru
      _
    %p81 = scmp.eq.s32.totalorder 0, 0
    %s82 = scalar_select %p81, 0, 0
    %s83 = smul.u32 16, %s82
    %p85 = scmp.eq.s32.totalorder 0, 0
    // Predicated region
    $region38: #{tpu_custom_call.1} parent=1 // pred_check
      %p86 = pneg %p85
    $region39: #{tpu_custom_call.1} parent=1 // pred_check_branch
      %88 = sbr.rel (%p86) target = $region41
    $region40: #{tpu_custom_call.1} parent=1 // pred_region
      %v89 = vld [vmem:[%s2] sm:$0x1]
      %v91 = vlaneseq
      %v92 = vshrl.u32 %v91, 7
      %v93 = vsub.s32 0, %v92
      %v94 = vrot.slane %v89, %v93
      %96 = vst [vmem:[#allocation2] sm:$0xff] %v94
      %97 = vst [vmem:[#allocation2 + $0x8] sm:$0xff] %v94
    $region41: #{tpu_custom_call.1} parent=1 // pred_fallthru
      _
    %p98 = scmp.eq.s32.totalorder 0, 0
    %p99 = pnand %p98, %p85
    %p100 = pneg %p99
    // Predicated region
    $region42: #{tpu_custom_call.1} parent=1 // pred_check
      _
    $region43: #{tpu_custom_call.1} parent=1 // pred_check_branch
      %102 = sbr.rel (%p99) target = $region45
    $region44: #{tpu_custom_call.1} parent=1 // pred_region
      %103 = vst [vmem:[#allocation3] sm:$0xff] 0.0
      %104 = vst [vmem:[#allocation3 + $0x8] sm:$0xff] 0.0
    $region45: #{tpu_custom_call.1} parent=1 // pred_fallthru
      _
    %v105 = vld [vmem:[#allocation4] sm:$0xf]
    %v106 = vld [vmem:[#allocation4 + $0x4] sm:$0xf]
    %v107 = vld [vmem:[#allocation2] sm:$0xff]
    %v108 = vld [vmem:[#allocation2 + $0x8] sm:$0xff]
    %v109 = vld [vmem:[#allocation7] sm:$0xf]
    %v110 = vld [vmem:[#allocation7 + $0x4] sm:$0xf]
    %v111 = vld [vmem:[#allocation7 + $0x8] sm:$0xf]
    %v112 = vld [vmem:[#allocation7 + $0xc] sm:$0xf]
    %v113 = vld [vmem:[#allocation7 + $0x10] sm:$0xf]
    %v114 = vld [vmem:[#allocation7 + $0x14] sm:$0xf]
    %v115 = vld [vmem:[#allocation7 + $0x18] sm:$0xf]
    %v116 = vld [vmem:[#allocation7 + $0x1c] sm:$0xf]
    %v117 = vld [vmem:[#allocation7 + $0x20] sm:$0xf]
    %v118 = vld [vmem:[#allocation7 + $0x24] sm:$0xf]
    %v119 = vld [vmem:[#allocation7 + $0x28] sm:$0xf]
    %v120 = vld [vmem:[#allocation7 + $0x2c] sm:$0xf]
    %v121 = vld [vmem:[#allocation7 + $0x30] sm:$0xf]
    %v122 = vld [vmem:[#allocation7 + $0x34] sm:$0xf]
    %v123 = vld [vmem:[#allocation7 + $0x38] sm:$0xf]
    %v124 = vld [vmem:[#allocation7 + $0x3c] sm:$0xf]
    %v127 = vunpack.c.l.b16 %v105
    %v128 = vunpack.c.l.b16 %v106
    %v129 = vpack.c.b16 %v128, %v127
    %v147 = vunpack.c.l.b16 %v109
    %v148 = vunpack.c.l.b16 %v110
    %v149 = vunpack.c.l.b16 %v111
    %v150 = vunpack.c.l.b16 %v112
    %v151 = vunpack.c.l.b16 %v113
    %v152 = vunpack.c.l.b16 %v114
    %v153 = vunpack.c.l.b16 %v115
    %v154 = vunpack.c.l.b16 %v116
    %v155 = vunpack.c.l.b16 %v117
    %v156 = vunpack.c.l.b16 %v118
    %v157 = vunpack.c.l.b16 %v119
    %v158 = vunpack.c.l.b16 %v120
    %v159 = vunpack.c.l.b16 %v121
    %v160 = vunpack.c.l.b16 %v122
    %v161 = vunpack.c.l.b16 %v123
    %v162 = vunpack.c.l.b16 %v124
    %v163 = vpack.c.b16 %v148, %v147
    %v164 = vpack.c.b16 %v150, %v149
    %v165 = vpack.c.b16 %v152, %v151
    %v166 = vpack.c.b16 %v154, %v153
    %v167 = vpack.c.b16 %v156, %v155
    %v168 = vpack.c.b16 %v158, %v157
    %v169 = vpack.c.b16 %v160, %v159
    %v170 = vpack.c.b16 %v162, %v161
    %179 = vmatprep.subr.bf16.mxu0 0
    %180 = vmatpush1.bf16.msra.mxu0 %v163
    %181 = vmatprep.subr.bf16.mxu0 0
    %182 = vmatpush1.bf16.msra.mxu0 %v164
    %183 = vmatprep.subr.bf16.mxu0 0
    %184 = vmatpush1.bf16.msra.mxu0 %v165
    %185 = vmatprep.subr.bf16.mxu0 0
    %186 = vmatpush1.bf16.msra.mxu0 %v166
    %187 = vmatprep.subr.bf16.mxu0 0
    %188 = vmatpush1.bf16.msra.mxu0 %v167
    %189 = vmatprep.subr.bf16.mxu0 0
    %190 = vmatpush1.bf16.msra.mxu0 %v168
    %191 = vmatprep.subr.bf16.mxu0 0
    %192 = vmatpush1.bf16.msra.mxu0 %v169
    %193 = vmatprep.subr.bf16.mxu0 0
    %194 = vmatpush1.bf16.msra.mxu0 %v170
    %195 = vmatprep.subr.bf16.mxu0 0
    %196 = vmatpush1.bf16.msra.mxu0 0
    %197 = vmatprep.subr.bf16.mxu0 0
    %198 = vmatpush1.bf16.msra.mxu0 0
    %199 = vmatprep.subr.bf16.mxu0 0
    %200 = vmatpush1.bf16.msra.mxu0 0
    %201 = vmatprep.subr.bf16.mxu0 0
    %202 = vmatpush1.bf16.msra.mxu0 0
    %203 = vmatprep.subr.bf16.mxu0 0
    %204 = vmatpush1.bf16.msra.mxu0 0
    %205 = vmatprep.subr.bf16.mxu0 0
    %206 = vmatpush1.bf16.msra.mxu0 0
    %207 = vmatprep.subr.bf16.mxu0 0
    %208 = vmatpush1.bf16.msra.mxu0 0
    %209 = vmatprep.subr.bf16.mxu0 0
    %210 = vmatpush1.bf16.msra.mxu0 0
    %211 = vmatprep.mubr.bf16.mxu0 0
    %212 = vmatmul.mubr.bf16.gmra.mrb[0].mxu0 %v129
    %v213 = vpop.f32.mrb[0].mxu0
    %v214 = vadd.f32 0.0, %v213
    %v215 = vpop.f32.mrb[0].mxu0
    %v216 = vpop.f32.mrb[0].mxu0
    %v217 = vadd.f32 0.0, %v216
    %v218 = vpop.f32.mrb[0].mxu0
    %219 = vdwg.mxu0
    %v220 = vadd.f32 %v107, %v214
    %v221 = vadd.f32 %v108, %v217
    %222 = vst [vmem:[#allocation2] sm:$0xff] %v220
    %223 = vst [vmem:[#allocation2 + $0x8] sm:$0xff] %v221
    // Predicated region
    $region46: #{tpu_custom_call.1} parent=1 // pred_check
      %p224 = pneg %p98
    $region47: #{tpu_custom_call.1} parent=1 // pred_check_branch
      %226 = sbr.rel (%p224) target = $region49
    $region48: #{tpu_custom_call.1} parent=1 // pred_region
      %v227 = vld [vmem:[#allocation3] sm:$0xff]
      %v228 = vld [vmem:[#allocation3 + $0x8] sm:$0xff]
      %v229 = vld [vmem:[#allocation9] sm:$0xf]
      %v230 = vld [vmem:[#allocation9 + $0x4] sm:$0xf]
      %v231 = vld [vmem:[#allocation9 + $0x8] sm:$0xf]
      %v232 = vld [vmem:[#allocation9 + $0xc] sm:$0xf]
      %v233 = vld [vmem:[#allocation9 + $0x10] sm:$0xf]
      %v234 = vld [vmem:[#allocation9 + $0x14] sm:$0xf]
      %v235 = vld [vmem:[#allocation9 + $0x18] sm:$0xf]
      %v236 = vld [vmem:[#allocation9 + $0x1c] sm:$0xf]
      %v237 = vld [vmem:[#allocation9 + $0x20] sm:$0xf]
      %v238 = vld [vmem:[#allocation9 + $0x24] sm:$0xf]
      %v239 = vld [vmem:[#allocation9 + $0x28] sm:$0xf]
      %v240 = vld [vmem:[#allocation9 + $0x2c] sm:$0xf]
      %v241 = vld [vmem:[#allocation9 + $0x30] sm:$0xf]
      %v242 = vld [vmem:[#allocation9 + $0x34] sm:$0xf]
      %v243 = vld [vmem:[#allocation9 + $0x38] sm:$0xf]
      %v244 = vld [vmem:[#allocation9 + $0x3c] sm:$0xf]
      %v261 = vunpack.c.l.b16 %v229
      %v262 = vunpack.c.l.b16 %v230
      %v263 = vunpack.c.l.b16 %v231
      %v264 = vunpack.c.l.b16 %v232
      %v265 = vunpack.c.l.b16 %v233
      %v266 = vunpack.c.l.b16 %v234
      %v267 = vunpack.c.l.b16 %v235
      %v268 = vunpack.c.l.b16 %v236
      %v269 = vunpack.c.l.b16 %v237
      %v270 = vunpack.c.l.b16 %v238
      %v271 = vunpack.c.l.b16 %v239
      %v272 = vunpack.c.l.b16 %v240
      %v273 = vunpack.c.l.b16 %v241
      %v274 = vunpack.c.l.b16 %v242
      %v275 = vunpack.c.l.b16 %v243
      %v276 = vunpack.c.l.b16 %v244
      %v277 = vpack.c.b16 %v262, %v261
      %v278 = vpack.c.b16 %v264, %v263
      %v279 = vpack.c.b16 %v266, %v265
      %v280 = vpack.c.b16 %v268, %v267
      %v281 = vpack.c.b16 %v270, %v269
      %v282 = vpack.c.b16 %v272, %v271
      %v283 = vpack.c.b16 %v274, %v273
      %v284 = vpack.c.b16 %v276, %v275
      %293 = vmatprep.subr.bf16.mxu0 0
      %294 = vmatpush1.bf16.msra.mxu0 %v277
      %295 = vmatprep.subr.bf16.mxu0 0
      %296 = vmatpush1.bf16.msra.mxu0 %v278
      %297 = vmatprep.subr.bf16.mxu0 0
      %298 = vmatpush1.bf16.msra.mxu0 %v279
      %299 = vmatprep.subr.bf16.mxu0 0
      %300 = vmatpush1.bf16.msra.mxu0 %v280
      %301 = vmatprep.subr.bf16.mxu0 0
      %302 = vmatpush1.bf16.msra.mxu0 %v281
      %303 = vmatprep.subr.bf16.mxu0 0
      %304 = vmatpush1.bf16.msra.mxu0 %v282
      %305 = vmatprep.subr.bf16.mxu0 0
      %306 = vmatpush1.bf16.msra.mxu0 %v283
      %307 = vmatprep.subr.bf16.mxu0 0
      %308 = vmatpush1.bf16.msra.mxu0 %v284
      %309 = vmatprep.subr.bf16.mxu0 0
      %310 = vmatpush1.bf16.msra.mxu0 0
      %311 = vmatprep.subr.bf16.mxu0 0
      %312 = vmatpush1.bf16.msra.mxu0 0
      %313 = vmatprep.subr.bf16.mxu0 0
      %314 = vmatpush1.bf16.msra.mxu0 0
      %315 = vmatprep.subr.bf16.mxu0 0
      %316 = vmatpush1.bf16.msra.mxu0 0
      %317 = vmatprep.subr.bf16.mxu0 0
      %318 = vmatpush1.bf16.msra.mxu0 0
      %319 = vmatprep.subr.bf16.mxu0 0
      %320 = vmatpush1.bf16.msra.mxu0 0
      %321 = vmatprep.subr.bf16.mxu0 0
      %322 = vmatpush1.bf16.msra.mxu0 0
      %323 = vmatprep.subr.bf16.mxu0 0
      %324 = vmatpush1.bf16.msra.mxu0 0
      %325 = vmatprep.mubr.bf16.mxu0 0
      %326 = vmatmul.mubr.bf16.gmra.mrb[0].mxu0 %v129
      %v327 = vpop.f32.mrb[0].mxu0
      %v328 = vadd.f32 0.0, %v327
      %v329 = vpop.f32.mrb[0].mxu0
      %v330 = vpop.f32.mrb[0].mxu0
      %v331 = vadd.f32 0.0, %v330
      %v332 = vpop.f32.mrb[0].mxu0
      %333 = vdwg.mxu0
      %v334 = vadd.f32 %v227, %v328
      %v335 = vadd.f32 %v228, %v331
      %336 = vst [vmem:[#allocation3] sm:$0xff] %v334
      %337 = vst [vmem:[#allocation3 + $0x8] sm:$0xff] %v335
    $region49: #{tpu_custom_call.1} parent=1 // pred_fallthru
      _
    // Predicated region
    $region50: #{tpu_custom_call.1} parent=1 // pred_check
      %p338 = pneg %p85
    $region51: #{tpu_custom_call.1} parent=1 // pred_check_branch
      %340 = sbr.rel (%p338) target = $region53
    $region52: #{tpu_custom_call.1} parent=1 // pred_region
      %v341 = vld [vmem:[#allocation3] sm:$0xff]
      %v342 = vld [vmem:[#allocation3 + $0x8] sm:$0xff]
      %v343 = vpack.c.bf16 %v342, %v341
      %v344 = vld [vmem:[#allocation10] sm:$0xf]
      %v345 = vld [vmem:[#allocation10 + $0x4] sm:$0xf]
      %v346 = vld [vmem:[#allocation10 + $0x8] sm:$0xf]
      %v347 = vld [vmem:[#allocation10 + $0xc] sm:$0xf]
      %v348 = vld [vmem:[#allocation10 + $0x10] sm:$0xf]
      %v349 = vld [vmem:[#allocation10 + $0x14] sm:$0xf]
      %v350 = vld [vmem:[#allocation10 + $0x18] sm:$0xf]
      %v351 = vld [vmem:[#allocation10 + $0x1c] sm:$0xf]
      %v352 = vld [vmem:[#allocation10 + $0x20] sm:$0xf]
      %v353 = vld [vmem:[#allocation10 + $0x24] sm:$0xf]
      %v354 = vld [vmem:[#allocation10 + $0x28] sm:$0xf]
      %v355 = vld [vmem:[#allocation10 + $0x2c] sm:$0xf]
      %v356 = vld [vmem:[#allocation10 + $0x30] sm:$0xf]
      %v357 = vld [vmem:[#allocation10 + $0x34] sm:$0xf]
      %v358 = vld [vmem:[#allocation10 + $0x38] sm:$0xf]
      %v359 = vld [vmem:[#allocation10 + $0x3c] sm:$0xf]
      %v376 = vunpack.c.l.b16 %v344
      %v377 = vunpack.c.l.b16 %v345
      %v378 = vunpack.c.l.b16 %v346
      %v379 = vunpack.c.l.b16 %v347
      %v380 = vunpack.c.l.b16 %v348
      %v381 = vunpack.c.l.b16 %v349
      %v382 = vunpack.c.l.b16 %v350
      %v383 = vunpack.c.l.b16 %v351
      %v384 = vunpack.c.l.b16 %v352
      %v385 = vunpack.c.l.b16 %v353
      %v386 = vunpack.c.l.b16 %v354
      %v387 = vunpack.c.l.b16 %v355
      %v388 = vunpack.c.l.b16 %v356
      %v389 = vunpack.c.l.b16 %v357
      %v390 = vunpack.c.l.b16 %v358
      %v391 = vunpack.c.l.b16 %v359
      %v392 = vpack.c.b16 %v377, %v376
      %v393 = vpack.c.b16 %v379, %v378
      %v394 = vpack.c.b16 %v381, %v380
      %v395 = vpack.c.b16 %v383, %v382
      %v396 = vpack.c.b16 %v385, %v384
      %v397 = vpack.c.b16 %v387, %v386
      %v398 = vpack.c.b16 %v389, %v388
      %v399 = vpack.c.b16 %v391, %v390
      %408 = vmatprep.subr.bf16.mxu0 0
      %409 = vmatpush1.bf16.msra.mxu0 %v392
      %410 = vmatprep.subr.bf16.mxu0 0
      %411 = vmatpush1.bf16.msra.mxu0 %v393
      %412 = vmatprep.subr.bf16.mxu0 0
      %413 = vmatpush1.bf16.msra.mxu0 %v394
      %414 = vmatprep.subr.bf16.mxu0 0
      %415 = vmatpush1.bf16.msra.mxu0 %v395
      %416 = vmatprep.subr.bf16.mxu0 0
      %417 = vmatpush1.bf16.msra.mxu0 %v396
      %418 = vmatprep.subr.bf16.mxu0 0
      %419 = vmatpush1.bf16.msra.mxu0 %v397
      %420 = vmatprep.subr.bf16.mxu0 0
      %421 = vmatpush1.bf16.msra.mxu0 %v398
      %422 = vmatprep.subr.bf16.mxu0 0
      %423 = vmatpush1.bf16.msra.mxu0 %v399
      %424 = vmatprep.subr.bf16.mxu0 0
      %425 = vmatpush1.bf16.msra.mxu0 0
      %426 = vmatprep.subr.bf16.mxu0 0
      %427 = vmatpush1.bf16.msra.mxu0 0
      %428 = vmatprep.subr.bf16.mxu0 0
      %429 = vmatpush1.bf16.msra.mxu0 0
      %430 = vmatprep.subr.bf16.mxu0 0
      %431 = vmatpush1.bf16.msra.mxu0 0
      %432 = vmatprep.subr.bf16.mxu0 0
      %433 = vmatpush1.bf16.msra.mxu0 0
      %434 = vmatprep.subr.bf16.mxu0 0
      %435 = vmatpush1.bf16.msra.mxu0 0
      %436 = vmatprep.subr.bf16.mxu0 0
      %437 = vmatpush1.bf16.msra.mxu0 0
      %438 = vmatprep.subr.bf16.mxu0 0
      %439 = vmatpush1.bf16.msra.mxu0 0
      %440 = vmatprep.mubr.bf16.mxu0 0
      %441 = vmatmul.mubr.bf16.gmra.mrb[0].mxu0 %v343
      %v442 = vpop.f32.mrb[0].mxu0
      %v443 = vadd.f32 0.0, %v442
      %v444 = vpop.f32.mrb[0].mxu0
      %v445 = vpop.f32.mrb[0].mxu0
      %v446 = vadd.f32 0.0, %v445
      %v447 = vpop.f32.mrb[0].mxu0
      %448 = vdwg.mxu0
      %v449 = vld [vmem:[#allocation2] sm:$0xff]
      %v450 = vld [vmem:[#allocation2 + $0x8] sm:$0xff]
      %v451 = vadd.f32 %v449, %v443
      %v452 = vadd.f32 %v450, %v446
      %453 = vst [vmem:[#allocation12] sm:$0xff] %v451
      %454 = vst [vmem:[#allocation12 + $0x8] sm:$0xff] %v452
    $region53: #{tpu_custom_call.1} parent=1 // pred_fallthru
      _
    // Predicated region
    $region54: #{tpu_custom_call.1} parent=1 // pred_check
      _
    $region55: #{tpu_custom_call.1} parent=1 // pred_check_branch
      %456 = sbr.rel (0) target = $region57
    $region56: #{tpu_custom_call.1} parent=1 // pred_region
      %s458 = ssub.s32 256, 256
      %459 = vsyncadd [#allocation6], %s458
      %s460 = sshll.u32 [#allocation12], 4
      %s461 = int_to_ptr.vmem [resolvable:$true] %s460
      %466 = dma.vmem_to_hbm [thread:$0]  %s461, 256, %s5, [#allocation6], 128, 128, 8
    $region57: #{tpu_custom_call.1} parent=1 // pred_fallthru
      _
    // Predicated region
    $region58: #{tpu_custom_call.1} parent=1 // pred_check
      _
    $region59: #{tpu_custom_call.1} parent=1 // pred_check_branch
      %468 = sbr.rel (0) target = $region61
    $region60: #{tpu_custom_call.1} parent=1 // pred_region
      %469 = dma.done [#allocation6], 256
    $region61: #{tpu_custom_call.1} parent=1 // pred_fallthru
      _
    %470 = vsyncpa [#allocation5], 1
    %471 = vsyncpa [#allocation8], 1
    %472 = vsyncpa [#allocation11], 1
    %473 = vsyncpa [#allocation6], 1

</llo_original>
